<compile_context>
chip_gen: v7x
topology: tpu7x:2x2x1
jax: 0.10.0
libtpu: 0.0.40
codegen_flags: <defaults>
</compile_context>

<pallas_src>
import math

import jax
import jax.numpy as jnp
import numpy as np
from jax import lax
from jax.experimental import pallas as pl
from jax.experimental.pallas import tpu as pltpu

# ----- static model / problem sizes -----
HIDDEN = 32
NUM_HEADS = 4
HEAD_DIM = HIDDEN // NUM_HEADS
INTERMED = 64
SEQ_IN = 16
SEQ_OUT = 8                      # length_factor = 0.5 -> funnel pooling branch
LF_INV = SEQ_IN // SEQ_OUT
BATCH = 2
LN_EPS = 1e-12

NTOK_IN = SEQ_IN * BATCH         # 32 key tokens (rows), seq-major / batch-minor
NTOK_OUT = SEQ_OUT * BATCH       # 16 pooled query tokens
SCORE_W = NUM_HEADS * NTOK_IN    # 128-lane fused per-head score tile

# ----- parameter-slab layout (bf16, all blocks row-aligned at lane offset 0) -----
SLAB_LANES = SCORE_W             # 128
R_QW = 0                          # (H, H)   q weight  (LN1 gamma + 1/sqrt(hd) folded)
R_KW = R_QW + HIDDEN              # (H, H)   k weight  (LN1 gamma folded)
R_VW = R_KW + HIDDEN              # (H, H)   v weight  (LN1 gamma folded)
R_AW = R_VW + HIDDEN              # (H, H)   attention output weight
R_F1 = R_AW + HIDDEN              # (H, I)   ffn_in weight (LN2 gamma folded)
R_F2 = R_F1 + HIDDEN              # (I, H)   ffn_out weight
R_JH = R_F2 + INTERMED            # (H, H)   ones/H  -> LN mean / mean-of-squares on the MXU
R_BD = R_JH + HIDDEN              # (NH*KT, H) 0/1 block-diagonal head mask
R_AM = R_BD + SCORE_W             # (QT, NH*KT) additive cross-batch mask (0 / -1e9)
RB_Q = R_AM + NTOK_OUT            # bias rows (one sublane row each, lane offset 0)
RB_K = RB_Q + 1
RB_V = RB_K + 1
RB_A = RB_V + 1
RB_F1 = RB_A + 1
RB_F2 = RB_F1 + 1
SLAB_ROWS = 416                   # pad to a multiple of 16 (bf16 sublane packing)


def _pool(x, chunk, n_chunks):
    # torch: states.view(lf_inv, seq_out, B, H).mean(dim=0) on a sequence-first tensor
    # == mean of contiguous row-chunks of length `chunk` in the flattened (seq-major) view.
    acc = x[0:chunk, :]
    for i in range(1, n_chunks):
        acc = acc + x[i * chunk:(i + 1) * chunk, :]
    return acc * (1.0 / n_chunks)


def _gelu(x):
    # exact GELU (erf), matching torch.nn.GELU default
    return 0.5 * x * (1.0 + lax.erf(x * (1.0 / math.sqrt(2.0))))


def _ln_normalize(x, jh_b16):
    """LayerNorm without affine (affine is folded into the following weights).

    Row mean and mean-of-squares are computed on the (mostly idle) MXU via a ones(H,H)/H
    constant instead of XLU lane reductions; the centering/scaling stays in f32.
    """
    f32 = jnp.float32
    mu = jnp.dot(x.astype(jnp.bfloat16), jh_b16, preferred_element_type=f32)
    xc = x - mu
    var = jnp.dot((xc * xc).astype(jnp.bfloat16), jh_b16, preferred_element_type=f32)
    return xc * lax.rsqrt(var + LN_EPS)


def funnel_layer_kernel(x_ref, w_ref, out_ref):
    f32 = jnp.float32
    bf16 = jnp.bfloat16
    H, I = HIDDEN, INTERMED
    KT, QT = NTOK_IN, NTOK_OUT

    x = x_ref[...].astype(f32)                                   # (KT, H)

    # ---- parameter slab (all slices row-indexed, lane offset 0) ----
    q_w = w_ref[R_QW:R_QW + H, 0:H]                              # bf16
    k_w = w_ref[R_KW:R_KW + H, 0:H]
    v_w = w_ref[R_VW:R_VW + H, 0:H]
    a_w = w_ref[R_AW:R_AW + H, 0:H]
    f1_w = w_ref[R_F1:R_F1 + H, 0:I]
    f2_w = w_ref[R_F2:R_F2 + I, 0:H]
    jh = w_ref[R_JH:R_JH + H, 0:H]                               # ones/H (bf16-exact)
    bd16 = w_ref[R_BD:R_BD + SCORE_W, 0:H]                       # 0/1 block-diag head mask (bf16)
    amask = w_ref[R_AM:R_AM + QT, 0:SCORE_W].astype(f32)         # additive cross-batch mask

    q_b = w_ref[RB_Q:RB_Q + 1, 0:H].astype(f32)
    k_b = w_ref[RB_K:RB_K + 1, 0:H].astype(f32)
    v_b = w_ref[RB_V:RB_V + 1, 0:H].astype(f32)
    a_b = w_ref[RB_A:RB_A + 1, 0:H].astype(f32)
    f1_b = w_ref[RB_F1:RB_F1 + 1, 0:I].astype(f32)
    f2_b = w_ref[RB_F2:RB_F2 + 1, 0:H].astype(f32)

    # ---- funnel pooling of the residual stream (exact f32, length_factor < 1 branch) ----
    new_states = _pool(x, QT, LF_INV)                            # (QT, H)

    # ---- pre-norm 1 (affine folded into q/k/v weights) + projections ----
    h1 = _ln_normalize(x, jh)                                    # (KT, H) f32
    h1b = h1.astype(bf16)
    k = jnp.dot(h1b, k_w, preferred_element_type=f32) + k_b      # (KT, H) head-contiguous
    v = jnp.dot(h1b, v_w, preferred_element_type=f32) + v_b      # (KT, H)
    q_in = _pool(h1, QT, LF_INV).astype(bf16)                    # pooled queries (QT, H)
    q = (jnp.dot(q_in, q_w, preferred_element_type=f32) + q_b).astype(bf16)  # 1/sqrt(hd) folded

    # ---- fused multi-head attention: all heads & both batch elements, 4 MXU matmuls ----
    # Row-form block operands (no transpose): row block h carries head h's K / V, 0 elsewhere.
    bdf = bd16.astype(f32)
    kbd = (jnp.concatenate([k, k, k, k], axis=0) * bdf).astype(bf16)   # (NH*KT, H)
    vbd = (jnp.concatenate([v, v, v, v], axis=0) * bdf).astype(bf16)   # (NH*KT, H)

    # scores = q @ kbd^T via transposed-RHS contraction (native on the MXU)
    s = lax.dot_general(q, kbd, (((1,), (1,)), ((), ())),
                        preferred_element_type=f32)              # (QT, NH*KT)
    s = s + amask                                                # static cross-batch mask (finite)
    # Single full-row max is a valid softmax shift (per-head normalization below); assumes
    # per-head score spreads << 80, true for this model scale.
    m = jnp.max(s, axis=-1, keepdims=True)
    p = jnp.exp(s - m)                                           # masked cols underflow to exactly 0
    pb = p.astype(bf16)

    ctx_un = jnp.dot(pb, vbd, preferred_element_type=f32)        # (QT, H) unnormalized context
    den = jnp.dot(pb, bd16, preferred_element_type=f32)          # per-head denom, broadcast per head
    context = ctx_un * pl.reciprocal(den, approx=False)          # exact; EUP is idle anyway

    attn_out = jnp.dot(context.astype(bf16), a_w, preferred_element_type=f32) + a_b
    states = new_states + attn_out                               # dropout = identity (eval)

    # ---- pre-norm 2 (affine folded into ffn_in weights) + FFN ----
    h2 = _ln_normalize(states, jh).astype(bf16)
    inter = _gelu(jnp.dot(h2, f1_w, preferred_element_type=f32) + f1_b)
    ffn_out = jnp.dot(inter.astype(bf16), f2_w, preferred_element_type=f32) + f2_b

    out_ref[...] = (states + ffn_out).astype(out_ref.dtype)
    # TODO(synk): external attention_mask path (max-reduced mask added to scores) not wired;
    #             only the attention_mask=None case is implemented.


def _pack_params(params):
    """Pack all weights, biases and static masks into ONE bf16 slab (trace-time, free)."""
    (ln1_g, ln1_b, q_w, q_b, kv_w, kv_b, attn_w, attn_b,
     ln2_g, ln2_b, ffn_in_w, ffn_in_b, ffn_out_w, ffn_out_b) = params
    H, HD, NH = HIDDEN, HEAD_DIM, NUM_HEADS

    # de-interleave per-head [k_h | v_h] pairs -> contiguous K and V blocks
    kv_w_r = kv_w.reshape(H, NH, 2, HD)
    k_w = kv_w_r[:, :, 0, :].reshape(H, H)
    v_w = kv_w_r[:, :, 1, :].reshape(H, H)
    kv_b_r = kv_b.reshape(1, NH, 2, HD)
    k_b = kv_b_r[:, :, 0, :].reshape(1, H)
    v_b = kv_b_r[:, :, 1, :].reshape(1, H)

    # fold LN1 affine into q/k/v, LN2 affine into ffn_in, and 1/sqrt(head_dim) into q (exact)
    scale = 1.0 / math.sqrt(HD)
    g1 = ln1_g.reshape(H, 1)
    g2 = ln2_g.reshape(H, 1)
    q_wf = q_w * g1 * scale
    k_wf = k_w * g1
    v_wf = v_w * g1
    q_bf = (q_b + ln1_b @ q_w) * scale
    k_bf = k_b + ln1_b @ k_w
    v_bf = v_b + ln1_b @ v_w
    f1_wf = ffn_in_w * g2
    f1_bf = ffn_in_b + ln2_b @ ffn_in_w

    # static constants
    jh = np.full((H, H), 1.0 / H, np.float32)                     # exact in bf16 (2^-5)
    r_head = np.arange(SCORE_W)[:, None] // NTOK_IN
    c_head = np.arange(H)[None, :] // HD
    bd = (r_head == c_head).astype(np.float32)                    # (NH*KT, H) 0/1
    q_batch = np.arange(NTOK_OUT)[:, None] % BATCH
    k_batch = (np.arange(SCORE_W)[None, :] % NTOK_IN) % BATCH
    amask = np.where(q_batch == k_batch, 0.0, -1e9).astype(np.float32)  # finite: bf16-safe

    slab = jnp.zeros((SLAB_ROWS, SLAB_LANES), jnp.bfloat16)

    def put(s, r0, blk):
        blk = jnp.asarray(blk, jnp.float32).astype(jnp.bfloat16)
        return s.at[r0:r0 + blk.shape[0], 0:blk.shape[1]].set(blk)

    slab = put(slab, R_QW, q_wf)
    slab = put(slab, R_KW, k_wf)
    slab = put(slab, R_VW, v_wf)
    slab = put(slab, R_AW, attn_w)
    slab = put(slab, R_F1, f1_wf)
    slab = put(slab, R_F2, ffn_out_w)
    slab = put(slab, R_JH, jh)
    slab = put(slab, R_BD, bd)
    slab = put(slab, R_AM, amask)
    slab = put(slab, RB_Q, q_bf)
    slab = put(slab, RB_K, k_bf)
    slab = put(slab, RB_V, v_bf)
    slab = put(slab, RB_A, attn_b)
    slab = put(slab, RB_F1, f1_bf)
    slab = put(slab, RB_F2, ffn_out_b)
    return slab


def funnel_layer(states, params):
    """states: [S_in, B, H] -> [S_out, B, H]. Single grid-less pallas_call, 2 input DMAs."""
    S, B, H = states.shape
    assert S == SEQ_IN and B == BATCH and H == HIDDEN
    x2 = states.reshape(NTOK_IN, H)                    # free: contiguous merge of (S, B)
    slab = _pack_params(params)
    out = pl.pallas_call(
        funnel_layer_kernel,
        out_shape=jax.ShapeDtypeStruct((NTOK_OUT, H), states.dtype),
        in_specs=[pl.BlockSpec(memory_space=pltpu.MemorySpace.VMEM),
                  pl.BlockSpec(memory_space=pltpu.MemorySpace.VMEM)],
        out_specs=pl.BlockSpec(memory_space=pltpu.MemorySpace.VMEM),
    )(x2, slab)
    return out.reshape(SEQ_OUT, B, H)                  # free: contiguous split


# ---------------- pure-JAX reference (plain per-batch / per-head math, exact f32) ----------------
def _layernorm_ref(x, gamma, beta, eps):
    mu = jnp.mean(x, axis=-1, keepdims=True)
    xc = x - mu
    var = jnp.mean(xc * xc, axis=-1, keepdims=True)
    return xc * lax.rsqrt(var + eps) * gamma + beta


def _ref_single(x, params):
    (ln1_g, ln1_b, q_w, q_b, kv_w, kv_b, attn_w, attn_b,
     ln2_g, ln2_b, ffn_in_w, ffn_in_b, ffn_out_w, ffn_out_b) = params
    new_states = _pool(x, SEQ_OUT, LF_INV)
    h1 = _layernorm_ref(x, ln1_g, ln1_b, LN_EPS)
    q_src = _pool(h1, SEQ_OUT, LF_INV)
    q = q_src @ q_w + q_b
    kv = h1 @ kv_w + kv_b
    scale = 1.0 / math.sqrt(HEAD_DIM)
    ctx = []
    for h in range(NUM_HEADS):
        qh = q[:, h * HEAD_DIM:(h + 1) * HEAD_DIM]
        kh = kv[:, h * 2 * HEAD_DIM: h * 2 * HEAD_DIM + HEAD_DIM]
        vh = kv[:, h * 2 * HEAD_DIM + HEAD_DIM:(h + 1) * 2 * HEAD_DIM]
        s = qh @ kh.T * scale
        p = jax.nn.softmax(s, axis=-1)
        ctx.append(p @ vh)
    context = jnp.concatenate(ctx, axis=-1)
    states = new_states + context @ attn_w + attn_b
    h2 = _layernorm_ref(states, ln2_g, ln2_b, LN_EPS)
    ffn = _gelu(h2 @ ffn_in_w + ffn_in_b) @ ffn_out_w + ffn_out_b
    return states + ffn


def funnel_layer_ref(states, params):
    x = jnp.transpose(states, (1, 0, 2))               # [B, S, H]
    out = jax.vmap(lambda xb: _ref_single(xb, params))(x)
    return jnp.transpose(out, (1, 0, 2))               # [S_out, B, H]


if __name__ == "__main__":
    key = jax.random.PRNGKey(0)
    ks = jax.random.split(key, 16)

    def init(k, shape, scale=0.02):
        return (scale * jax.random.normal(k, shape)).astype(jnp.float32)

    params = (
        1.0 + init(ks[0], (1, HIDDEN), 0.1),  # ln1 gamma (non-trivial: exercises the affine fold)
        init(ks[1], (1, HIDDEN), 0.1),        # ln1 beta
        init(ks[2], (HIDDEN, HIDDEN)),        # query W
        init(ks[3], (1, HIDDEN)),             # query b
        init(ks[4], (HIDDEN, 2 * HIDDEN)),    # key_value W (per-head interleaved [k|v])
        init(ks[5], (1, 2 * HIDDEN)),         # key_value b
        init(ks[6], (HIDDEN, HIDDEN)),        # attn output dense W
        init(ks[7], (1, HIDDEN)),             # attn output dense b
        1.0 + init(ks[8], (1, HIDDEN), 0.1),  # ln2 gamma
        init(ks[9], (1, HIDDEN), 0.1),        # ln2 beta
        init(ks[10], (HIDDEN, INTERMED)),     # ffn dense_in W
        init(ks[11], (1, INTERMED)),          # ffn dense_in b
        init(ks[12], (INTERMED, HIDDEN)),     # ffn dense_out W
        init(ks[13], (1, HIDDEN)),            # ffn dense_out b
    )

    states = jax.random.normal(ks[14], (SEQ_IN, BATCH, HIDDEN), dtype=jnp.float32)

    out = jax.block_until_ready(jax.jit(funnel_layer)(states, params))
    ref = jax.block_until_ready(funnel_layer_ref(states, params))

    # tolerance covers the bf16 matmul operands (f32 accumulation; residual path stays f32-exact)
    np.testing.assert_allclose(np.asarray(out), np.asarray(ref), rtol=2e-3, atol=2e-3)
    assert out.shape == (SEQ_OUT, BATCH, HIDDEN)

    print("KERNEL_OK")
</pallas_src>

<mosaic_0001>
module attributes {stable_mosaic.version = 11 : i64} {
  func.func @funnel_layer_kernel(%arg0: memref<32x32xf32, #tpu.memory_space<vmem>>, %arg1: memref<416x128xbf16, #tpu.memory_space<vmem>>, %arg2: memref<16x32xf32, #tpu.memory_space<vmem>>) attributes {dimension_semantics = [], scalar_prefetch = 0 : i64, scratch_operands = 0 : i64, tpu.core_type = #tpu.core_type<tc>} {
    %c0 = arith.constant 0 : index
    %c0_0 = arith.constant 0 : index
    %0 = vector.load %arg0[%c0, %c0_0] : memref<32x32xf32, #tpu.memory_space<vmem>>, vector<32x32xf32>
    %c0_1 = arith.constant 0 : index
    %c0_2 = arith.constant 0 : index
    %1 = vector.load %arg1[%c0_1, %c0_2] : memref<416x128xbf16, #tpu.memory_space<vmem>>, vector<32x32xbf16>
    %c32 = arith.constant 32 : index
    %c0_3 = arith.constant 0 : index
    %2 = vector.load %arg1[%c32, %c0_3] : memref<416x128xbf16, #tpu.memory_space<vmem>>, vector<32x32xbf16>
    %c64 = arith.constant 64 : index
    %c0_4 = arith.constant 0 : index
    %3 = vector.load %arg1[%c64, %c0_4] : memref<416x128xbf16, #tpu.memory_space<vmem>>, vector<32x32xbf16>
    %c96 = arith.constant 96 : index
    %c0_5 = arith.constant 0 : index
    %4 = vector.load %arg1[%c96, %c0_5] : memref<416x128xbf16, #tpu.memory_space<vmem>>, vector<32x32xbf16>
    %c128 = arith.constant 128 : index
    %c0_6 = arith.constant 0 : index
    %5 = vector.load %arg1[%c128, %c0_6] : memref<416x128xbf16, #tpu.memory_space<vmem>>, vector<32x64xbf16>
    %c160 = arith.constant 160 : index
    %c0_7 = arith.constant 0 : index
    %6 = vector.load %arg1[%c160, %c0_7] : memref<416x128xbf16, #tpu.memory_space<vmem>>, vector<64x32xbf16>
    %c224 = arith.constant 224 : index
    %c0_8 = arith.constant 0 : index
    %7 = vector.load %arg1[%c224, %c0_8] : memref<416x128xbf16, #tpu.memory_space<vmem>>, vector<32x32xbf16>
    %c256 = arith.constant 256 : index
    %c0_9 = arith.constant 0 : index
    %8 = vector.load %arg1[%c256, %c0_9] : memref<416x128xbf16, #tpu.memory_space<vmem>>, vector<128x32xbf16>
    %c384 = arith.constant 384 : index
    %c0_10 = arith.constant 0 : index
    %9 = vector.load %arg1[%c384, %c0_10] : memref<416x128xbf16, #tpu.memory_space<vmem>>, vector<16x128xbf16>
    %10 = arith.extf %9 : vector<16x128xbf16> to vector<16x128xf32>
    %c400 = arith.constant 400 : index
    %c0_11 = arith.constant 0 : index
    %11 = vector.load %arg1[%c400, %c0_11] : memref<416x128xbf16, #tpu.memory_space<vmem>>, vector<1x32xbf16>
    %12 = arith.extf %11 : vector<1x32xbf16> to vector<1x32xf32>
    %c401 = arith.constant 401 : index
    %c0_12 = arith.constant 0 : index
    %13 = vector.load %arg1[%c401, %c0_12] : memref<416x128xbf16, #tpu.memory_space<vmem>>, vector<1x32xbf16>
    %14 = arith.extf %13 : vector<1x32xbf16> to vector<1x32xf32>
    %c402 = arith.constant 402 : index
    %c0_13 = arith.constant 0 : index
    %15 = vector.load %arg1[%c402, %c0_13] : memref<416x128xbf16, #tpu.memory_space<vmem>>, vector<1x32xbf16>
    %16 = arith.extf %15 : vector<1x32xbf16> to vector<1x32xf32>
    %c403 = arith.constant 403 : index
    %c0_14 = arith.constant 0 : index
    %17 = vector.load %arg1[%c403, %c0_14] : memref<416x128xbf16, #tpu.memory_space<vmem>>, vector<1x32xbf16>
    %18 = arith.extf %17 : vector<1x32xbf16> to vector<1x32xf32>
    %c404 = arith.constant 404 : index
    %c0_15 = arith.constant 0 : index
    %19 = vector.load %arg1[%c404, %c0_15] : memref<416x128xbf16, #tpu.memory_space<vmem>>, vector<1x64xbf16>
    %20 = arith.extf %19 : vector<1x64xbf16> to vector<1x64xf32>
    %c405 = arith.constant 405 : index
    %c0_16 = arith.constant 0 : index
    %21 = vector.load %arg1[%c405, %c0_16] : memref<416x128xbf16, #tpu.memory_space<vmem>>, vector<1x32xbf16>
    %22 = arith.extf %21 : vector<1x32xbf16> to vector<1x32xf32>
    %23 = vector.extract_strided_slice %0 {offsets = [0, 0], sizes = [16, 32], strides = [1, 1]} : vector<32x32xf32> to vector<16x32xf32>
    %24 = vector.extract_strided_slice %0 {offsets = [16, 0], sizes = [16, 32], strides = [1, 1]} : vector<32x32xf32> to vector<16x32xf32>
    %25 = arith.addf %23, %24 : vector<16x32xf32>
    %cst = arith.constant 5.000000e-01 : f32
    %26 = vector.broadcast %cst : f32 to vector<16x32xf32>
    %27 = arith.mulf %25, %26 : vector<16x32xf32>
    %28 = arith.truncf %0 : vector<32x32xf32> to vector<32x32xbf16>
    %cst_17 = arith.constant dense<0.000000e+00> : vector<32x32xf32>
    %29 = tpu.matmul %28, %7, %cst_17 {dimension_numbers = #tpu.dot_dimension_numbers<[1], [0], [0], [1], [0, 0, 1, 1], [], []>} : vector<32x32xbf16>, vector<32x32xbf16>, vector<32x32xf32> -> vector<32x32xf32>
    %30 = arith.subf %0, %29 : vector<32x32xf32>
    %31 = arith.mulf %30, %30 : vector<32x32xf32>
    %32 = arith.truncf %31 : vector<32x32xf32> to vector<32x32xbf16>
    %cst_18 = arith.constant dense<0.000000e+00> : vector<32x32xf32>
    %33 = tpu.matmul %32, %7, %cst_18 {dimension_numbers = #tpu.dot_dimension_numbers<[1], [0], [0], [1], [0, 0, 1, 1], [], []>} : vector<32x32xbf16>, vector<32x32xbf16>, vector<32x32xf32> -> vector<32x32xf32>
    %cst_19 = arith.constant 9.99999996E-13 : f32
    %34 = vector.broadcast %cst_19 : f32 to vector<32x32xf32>
    %35 = arith.addf %33, %34 : vector<32x32xf32>
    %36 = math.rsqrt %35 : vector<32x32xf32>
    %37 = arith.mulf %30, %36 : vector<32x32xf32>
    %38 = arith.truncf %37 : vector<32x32xf32> to vector<32x32xbf16>
    %cst_20 = arith.constant dense<0.000000e+00> : vector<32x32xf32>
    %39 = tpu.matmul %38, %2, %cst_20 {dimension_numbers = #tpu.dot_dimension_numbers<[1], [0], [0], [1], [0, 0, 1, 1], [], []>} : vector<32x32xbf16>, vector<32x32xbf16>, vector<32x32xf32> -> vector<32x32xf32>
    %40 = vector.broadcast %14 : vector<1x32xf32> to vector<32x32xf32>
    %41 = arith.addf %39, %40 : vector<32x32xf32>
    %cst_21 = arith.constant dense<0.000000e+00> : vector<32x32xf32>
    %42 = tpu.matmul %38, %3, %cst_21 {dimension_numbers = #tpu.dot_dimension_numbers<[1], [0], [0], [1], [0, 0, 1, 1], [], []>} : vector<32x32xbf16>, vector<32x32xbf16>, vector<32x32xf32> -> vector<32x32xf32>
    %43 = vector.broadcast %16 : vector<1x32xf32> to vector<32x32xf32>
    %44 = arith.addf %42, %43 : vector<32x32xf32>
    %45 = vector.extract_strided_slice %37 {offsets = [0, 0], sizes = [16, 32], strides = [1, 1]} : vector<32x32xf32> to vector<16x32xf32>
    %46 = vector.extract_strided_slice %37 {offsets = [16, 0], sizes = [16, 32], strides = [1, 1]} : vector<32x32xf32> to vector<16x32xf32>
    %47 = arith.addf %45, %46 : vector<16x32xf32>
    %cst_22 = arith.constant 5.000000e-01 : f32
    %48 = vector.broadcast %cst_22 : f32 to vector<16x32xf32>
    %49 = arith.mulf %47, %48 : vector<16x32xf32>
    %50 = arith.truncf %49 : vector<16x32xf32> to vector<16x32xbf16>
    %cst_23 = arith.constant dense<0.000000e+00> : vector<16x32xf32>
    %51 = tpu.matmul %50, %1, %cst_23 {dimension_numbers = #tpu.dot_dimension_numbers<[1], [0], [0], [1], [0, 0, 1, 1], [], []>} : vector<16x32xbf16>, vector<32x32xbf16>, vector<16x32xf32> -> vector<16x32xf32>
    %52 = vector.broadcast %12 : vector<1x32xf32> to vector<16x32xf32>
    %53 = arith.addf %51, %52 : vector<16x32xf32>
    %54 = arith.truncf %53 : vector<16x32xf32> to vector<16x32xbf16>
    %55 = arith.extf %8 : vector<128x32xbf16> to vector<128x32xf32>
    %56 = tpu.concatenate %41, %41, %41, %41 in 0 : vector<32x32xf32>, vector<32x32xf32>, vector<32x32xf32>, vector<32x32xf32> -> vector<128x32xf32>
    %57 = arith.mulf %56, %55 : vector<128x32xf32>
    %58 = arith.truncf %57 : vector<128x32xf32> to vector<128x32xbf16>
    %59 = tpu.concatenate %44, %44, %44, %44 in 0 : vector<32x32xf32>, vector<32x32xf32>, vector<32x32xf32>, vector<32x32xf32> -> vector<128x32xf32>
    %60 = arith.mulf %59, %55 : vector<128x32xf32>
    %61 = arith.truncf %60 : vector<128x32xf32> to vector<128x32xbf16>
    %cst_24 = arith.constant dense<0.000000e+00> : vector<16x128xf32>
    %62 = tpu.matmul %54, %58, %cst_24 {dimension_numbers = #tpu.dot_dimension_numbers<[1], [1], [0], [0], [0, 0, 1, 0], [], []>} : vector<16x32xbf16>, vector<128x32xbf16>, vector<16x128xf32> -> vector<16x128xf32>
    %63 = arith.addf %62, %10 : vector<16x128xf32>
    %cst_25 = arith.constant dense<0xFF800000> : vector<16xf32>
    %64 = vector.multi_reduction <maximumf>, %63, %cst_25 [1] : vector<16x128xf32> to vector<16xf32>
    %65 = vector.shape_cast %64 : vector<16xf32> to vector<16x1xf32>
    %66 = vector.broadcast %65 : vector<16x1xf32> to vector<16x128xf32>
    %67 = arith.subf %63, %66 : vector<16x128xf32>
    %68 = math.exp %67 : vector<16x128xf32>
    %69 = arith.truncf %68 : vector<16x128xf32> to vector<16x128xbf16>
    %cst_26 = arith.constant dense<0.000000e+00> : vector<16x32xf32>
    %70 = tpu.matmul %69, %61, %cst_26 {dimension_numbers = #tpu.dot_dimension_numbers<[1], [0], [0], [1], [0, 0, 1, 1], [], []>} : vector<16x128xbf16>, vector<128x32xbf16>, vector<16x32xf32> -> vector<16x32xf32>
    %cst_27 = arith.constant dense<0.000000e+00> : vector<16x32xf32>
    %71 = tpu.matmul %69, %8, %cst_27 {dimension_numbers = #tpu.dot_dimension_numbers<[1], [0], [0], [1], [0, 0, 1, 1], [], []>} : vector<16x128xbf16>, vector<128x32xbf16>, vector<16x32xf32> -> vector<16x32xf32>
    %72 = tpu.reciprocal %71 : vector<16x32xf32> -> vector<16x32xf32>
    %73 = arith.mulf %70, %72 : vector<16x32xf32>
    %74 = arith.truncf %73 : vector<16x32xf32> to vector<16x32xbf16>
    %cst_28 = arith.constant dense<0.000000e+00> : vector<16x32xf32>
    %75 = tpu.matmul %74, %4, %cst_28 {dimension_numbers = #tpu.dot_dimension_numbers<[1], [0], [0], [1], [0, 0, 1, 1], [], []>} : vector<16x32xbf16>, vector<32x32xbf16>, vector<16x32xf32> -> vector<16x32xf32>
    %76 = vector.broadcast %18 : vector<1x32xf32> to vector<16x32xf32>
    %77 = arith.addf %75, %76 : vector<16x32xf32>
    %78 = arith.addf %27, %77 : vector<16x32xf32>
    %79 = arith.truncf %78 : vector<16x32xf32> to vector<16x32xbf16>
    %cst_29 = arith.constant dense<0.000000e+00> : vector<16x32xf32>
    %80 = tpu.matmul %79, %7, %cst_29 {dimension_numbers = #tpu.dot_dimension_numbers<[1], [0], [0], [1], [0, 0, 1, 1], [], []>} : vector<16x32xbf16>, vector<32x32xbf16>, vector<16x32xf32> -> vector<16x32xf32>
    %81 = arith.subf %78, %80 : vector<16x32xf32>
    %82 = arith.mulf %81, %81 : vector<16x32xf32>
    %83 = arith.truncf %82 : vector<16x32xf32> to vector<16x32xbf16>
    %cst_30 = arith.constant dense<0.000000e+00> : vector<16x32xf32>
    %84 = tpu.matmul %83, %7, %cst_30 {dimension_numbers = #tpu.dot_dimension_numbers<[1], [0], [0], [1], [0, 0, 1, 1], [], []>} : vector<16x32xbf16>, vector<32x32xbf16>, vector<16x32xf32> -> vector<16x32xf32>
    %cst_31 = arith.constant 9.99999996E-13 : f32
    %85 = vector.broadcast %cst_31 : f32 to vector<16x32xf32>
    %86 = arith.addf %84, %85 : vector<16x32xf32>
    %87 = math.rsqrt %86 : vector<16x32xf32>
    %88 = arith.mulf %81, %87 : vector<16x32xf32>
    %89 = arith.truncf %88 : vector<16x32xf32> to vector<16x32xbf16>
    %cst_32 = arith.constant dense<0.000000e+00> : vector<16x64xf32>
    %90 = tpu.matmul %89, %5, %cst_32 {dimension_numbers = #tpu.dot_dimension_numbers<[1], [0], [0], [1], [0, 0, 1, 1], [], []>} : vector<16x32xbf16>, vector<32x64xbf16>, vector<16x64xf32> -> vector<16x64xf32>
    %91 = vector.broadcast %20 : vector<1x64xf32> to vector<16x64xf32>
    %92 = arith.addf %90, %91 : vector<16x64xf32>
    %cst_33 = arith.constant 5.000000e-01 : f32
    %93 = vector.broadcast %cst_33 : f32 to vector<16x64xf32>
    %94 = arith.mulf %93, %92 : vector<16x64xf32>
    %cst_34 = arith.constant 0.707106769 : f32
    %95 = vector.broadcast %cst_34 : f32 to vector<16x64xf32>
    %96 = arith.mulf %92, %95 : vector<16x64xf32>
    %97 = math.erf %96 : vector<16x64xf32>
    %cst_35 = arith.constant 1.000000e+00 : f32
    %98 = vector.broadcast %cst_35 : f32 to vector<16x64xf32>
    %99 = arith.addf %98, %97 : vector<16x64xf32>
    %100 = arith.mulf %94, %99 : vector<16x64xf32>
    %101 = arith.truncf %100 : vector<16x64xf32> to vector<16x64xbf16>
    %cst_36 = arith.constant dense<0.000000e+00> : vector<16x32xf32>
    %102 = tpu.matmul %101, %6, %cst_36 {dimension_numbers = #tpu.dot_dimension_numbers<[1], [0], [0], [1], [0, 0, 1, 1], [], []>} : vector<16x64xbf16>, vector<64x32xbf16>, vector<16x32xf32> -> vector<16x32xf32>
    %103 = vector.broadcast %22 : vector<1x32xf32> to vector<16x32xf32>
    %104 = arith.addf %102, %103 : vector<16x32xf32>
    %105 = arith.addf %78, %104 : vector<16x32xf32>
    %c0_37 = arith.constant 0 : index
    %c0_38 = arith.constant 0 : index
    %106 = vector.load %arg2[%c0_37, %c0_38] : memref<16x32xf32, #tpu.memory_space<vmem>>, vector<16x32xf32>
    tpu.vector_store %arg2[%c0_37, %c0_38], %105 {strides = array<i32>} : memref<16x32xf32, #tpu.memory_space<vmem>>, vector<16x32xf32>,
    return
  }
}

</mosaic_0001>

<llo_original>
// kernel: funnel_layer.1
$region0: #{funnel_layer.1}
  #allocation0 [shape = 'u32[]', space=smem, size = 0x4, offset = 0x4, fixed_abs, tag = 'smem constant byte address 0x4 - core index']
  #allocation1 [shape = 'u32[144,128]{1,0:T(1,128)}', space=vmem, size = 0x12000, scoped, tag = 'internal scratch']
  %s0 = inlined_call_operand.vmem [shape: f32[32,32], index: 0, kind: input, shape index: {}]
  %s1 = inlined_call_operand.vmem [shape: bf16[416,128], index: 1, kind: input, shape index: {}]
  %s2 = inlined_call_operand.hbm [shape: f32[16,32], index: 2, kind: output, shape index: {}]
  %s3 = sld [smem:[#allocation0]]
  $region18: #{funnel_layer.1} parent=0
    _
  %s5 = ssub.s32 1, %s3
  %s6 = scalar_select 0, %s5, %s3
  $region1: #{funnel_layer.1} parent=0
    #allocation2 [shape = 'u8[8192]{0}', space=vmem, size = 0x2000, scoped, tag = 'output window, operand 0, single buffered']
    #allocation3 [shape = 's32[1]{0}', space=sflag, size = 0x4, scoped, tag = 'scoped memory for funnel_layer.1']
    %7 = vsyncpa [#allocation3], 0
    // Predicated region
    $region2: #{funnel_layer.1} parent=1 // pred_check
      _
    $region3: #{funnel_layer.1} parent=1 // pred_check_branch
      %9 = sbr.rel (0) target = $region5
    $region4: #{funnel_layer.1} parent=1 // pred_region
      _
    $region5: #{funnel_layer.1} parent=1 // pred_fallthru
      _
    // Predicated region
    $region6: #{funnel_layer.1} parent=1 // pred_check
      _
    $region7: #{funnel_layer.1} parent=1 // pred_check_branch
      %11 = sbr.rel (0) target = $region9
    $region8: #{funnel_layer.1} parent=1 // pred_region
      _
    $region9: #{funnel_layer.1} parent=1 // pred_fallthru
      _
    %v13 = vld [vmem:[%s0] sm:$0xff]
    %v14 = vld [vmem:[%s0 + $0x8] sm:$0xff]
    %v15 = vld [vmem:[%s0 + $0x10] sm:$0xff]
    %v16 = vld [vmem:[%s0 + $0x18] sm:$0xff]
    %v17 = vld [vmem:[%s1] sm:$0xf]
    %v18 = vld [vmem:[%s1 + $0x4] sm:$0xf]
    %v19 = vld [vmem:[%s1 + $0x8] sm:$0xf]
    %v20 = vld [vmem:[%s1 + $0xc] sm:$0xf]
    %v21 = vld [vmem:[%s1 + $0x10] sm:$0xf]
    %v22 = vld [vmem:[%s1 + $0x14] sm:$0xf]
    %v23 = vld [vmem:[%s1 + $0x18] sm:$0xf]
    %v24 = vld [vmem:[%s1 + $0x1c] sm:$0xf]
    %v25 = vld [vmem:[%s1 + $0x20] sm:$0xf]
    %v26 = vld [vmem:[%s1 + $0x24] sm:$0xf]
    %v27 = vld [vmem:[%s1 + $0x28] sm:$0xf]
    %v28 = vld [vmem:[%s1 + $0x2c] sm:$0xf]
    %v29 = vld [vmem:[%s1 + $0x30] sm:$0xf]
    %v30 = vld [vmem:[%s1 + $0x34] sm:$0xf]
    %v31 = vld [vmem:[%s1 + $0x38] sm:$0xf]
    %v32 = vld [vmem:[%s1 + $0x3c] sm:$0xf]
    %v33 = vld [vmem:[%s1 + $0x40] sm:$0xf]
    %v34 = vld [vmem:[%s1 + $0x44] sm:$0xf]
    %v35 = vld [vmem:[%s1 + $0x48] sm:$0xf]
    %v36 = vld [vmem:[%s1 + $0x4c] sm:$0xf]
    %v37 = vld [vmem:[%s1 + $0x50] sm:$0xf]
    %v38 = vld [vmem:[%s1 + $0x54] sm:$0xf]
    %v39 = vld [vmem:[%s1 + $0x58] sm:$0xf]
    %v40 = vld [vmem:[%s1 + $0x5c] sm:$0xf]
    %v41 = vld [vmem:[%s1 + $0x60] sm:$0xf]
    %v42 = vld [vmem:[%s1 + $0x64] sm:$0xf]
    %v43 = vld [vmem:[%s1 + $0x68] sm:$0xf]
    %v44 = vld [vmem:[%s1 + $0x6c] sm:$0xf]
    %v45 = vld [vmem:[%s1 + $0x70] sm:$0xf]
    %v46 = vld [vmem:[%s1 + $0x74] sm:$0xf]
    %v47 = vld [vmem:[%s1 + $0x78] sm:$0xf]
    %v48 = vld [vmem:[%s1 + $0x7c] sm:$0xf]
    %v49 = vld [vmem:[%s1 + $0x80] sm:$0xf]
    %v50 = vld [vmem:[%s1 + $0x84] sm:$0xf]
    %v51 = vld [vmem:[%s1 + $0x88] sm:$0xf]
    %v52 = vld [vmem:[%s1 + $0x8c] sm:$0xf]
    %v53 = vld [vmem:[%s1 + $0x90] sm:$0xf]
    %v54 = vld [vmem:[%s1 + $0x94] sm:$0xf]
    %v55 = vld [vmem:[%s1 + $0x98] sm:$0xf]
    %v56 = vld [vmem:[%s1 + $0x9c] sm:$0xf]
    %v57 = vld [vmem:[%s1 + $0xa0] sm:$0xf]
    %v58 = vld [vmem:[%s1 + $0xa4] sm:$0xf]
    %v59 = vld [vmem:[%s1 + $0xa8] sm:$0xf]
    %v60 = vld [vmem:[%s1 + $0xac] sm:$0xf]
    %v61 = vld [vmem:[%s1 + $0xb0] sm:$0xf]
    %v62 = vld [vmem:[%s1 + $0xb4] sm:$0xf]
    %v63 = vld [vmem:[%s1 + $0xb8] sm:$0xf]
    %v64 = vld [vmem:[%s1 + $0xbc] sm:$0xf]
    %v65 = vld [vmem:[%s1 + $0xc0] sm:$0xf]
    %v66 = vld [vmem:[%s1 + $0xc4] sm:$0xf]
    %v67 = vunpack.c.l.bf16 %v65
    %v68 = vunpack.c.l.bf16 %v66
    %v69 = vld [vmem:[%s1 + $0xc8] sm:$0x1]
    %v70 = vunpack.c.l.bf16 %v69
    %v71 = vld [vmem:[%s1 + $0xc8] sm:$0x2]
    %v72 = vunpack.c.l.bf16 %v71
    %v73 = vld [vmem:[%s1 + $0xc8] sm:$0x4]
    %v74 = vunpack.c.l.bf16 %v73
    %v75 = vadd.f32 %v13, %v15
    %v76 = vadd.f32 %v14, %v16
    %v77 = vmul.f32 %v75, 0.5
    %v78 = vmul.f32 %v76, 0.5
    %v79 = vpack.c.bf16 %v14, %v13
    %v80 = vpack.c.bf16 %v16, %v15
    %v85 = vunpack.c.l.b16 %v45
    %v86 = vunpack.c.l.b16 %v46
    %v87 = vunpack.c.l.b16 %v47
    %v88 = vunpack.c.l.b16 %v48
    %v89 = vpack.c.b16 %v86, %v85
    %v90 = vpack.c.b16 %v88, %v87
    %vm93 = vcmask 261120
    %v95 = vsel %vm93, %v79, 0
    %v98 = vsel %vm93, %v80, 0
    %100 = vmatprep.subr.bf16.mxu0 0
    %101 = vmatpush1.bf16.msra.mxu0 %v89
    %102 = vmatprep.subr.bf16.mxu0 0
    %103 = vmatpush1.bf16.msra.mxu0 %v90
    %104 = vmatprep.subr.bf16.mxu0 0
    %105 = vmatpush1.bf16.msra.mxu0 0
    %106 = vmatprep.subr.bf16.mxu0 0
    %107 = vmatpush1.bf16.msra.mxu0 0
    %108 = vmatprep.subr.bf16.mxu0 0
    %109 = vmatpush1.bf16.msra.mxu0 0
    %110 = vmatprep.subr.bf16.mxu0 0
    %111 = vmatpush1.bf16.msra.mxu0 0
    %112 = vmatprep.subr.bf16.mxu0 0
    %113 = vmatpush1.bf16.msra.mxu0 0
    %114 = vmatprep.subr.bf16.mxu0 0
    %115 = vmatpush1.bf16.msra.mxu0 0
    %116 = vmatprep.subr.bf16.mxu0 0
    %117 = vmatpush1.bf16.msra.mxu0 0
    %118 = vmatprep.subr.bf16.mxu0 0
    %119 = vmatpush1.bf16.msra.mxu0 0
    %120 = vmatprep.subr.bf16.mxu0 0
    %121 = vmatpush1.bf16.msra.mxu0 0
    %122 = vmatprep.subr.bf16.mxu0 0
    %123 = vmatpush1.bf16.msra.mxu0 0
    %124 = vmatprep.subr.bf16.mxu0 0
    %125 = vmatpush1.bf16.msra.mxu0 0
    %126 = vmatprep.subr.bf16.mxu0 0
    %127 = vmatpush1.bf16.msra.mxu0 0
    %128 = vmatprep.subr.bf16.mxu0 0
    %129 = vmatpush1.bf16.msra.mxu0 0
    %130 = vmatprep.subr.bf16.mxu0 0
    %131 = vmatpush1.bf16.msra.mxu0 0
    %132 = vmatprep.mubr.bf16.mxu0 0
    %133 = vmatmul.mubr.bf16.gmra.mrb[0].mxu0 %v95
    %v134 = vpop.f32.mrb[0].mxu0
    %v135 = vadd.f32 0.0, %v134
    %v136 = vpop.f32.mrb[0].mxu0
    %v137 = vpop.f32.mrb[0].mxu0
    %v138 = vadd.f32 0.0, %v137
    %v139 = vpop.f32.mrb[0].mxu0
    %140 = vmatprep.mubr.bf16.mxu0 0
    %141 = vmatmul.mubr.bf16.gmra.mrb[0].mxu0 %v98
    %v142 = vpop.f32.mrb[0].mxu0
    %v143 = vadd.f32 0.0, %v142
    %v144 = vpop.f32.mrb[0].mxu0
    %v145 = vpop.f32.mrb[0].mxu0
    %v146 = vadd.f32 0.0, %v145
    %v147 = vpop.f32.mrb[0].mxu0
    %148 = vdwg.mxu0
    %v149 = vsub.f32 %v13, %v135
    %v150 = vsub.f32 %v14, %v138
    %v151 = vsub.f32 %v15, %v143
    %v152 = vsub.f32 %v16, %v146
    %v153 = vmul.f32 %v149, %v149
    %v154 = vmul.f32 %v150, %v150
    %v155 = vmul.f32 %v151, %v151
    %v156 = vmul.f32 %v152, %v152
    %v157 = vpack.c.bf16 %v154, %v153
    %v158 = vpack.c.bf16 %v156, %v155
    %v160 = vsel %vm93, %v157, 0
    %v163 = vsel %vm93, %v158, 0
    %165 = vmatprep.subr.bf16.mxu0 0
    %166 = vmatpush1.bf16.msra.mxu0 %v89
    %167 = vmatprep.subr.bf16.mxu0 0
    %168 = vmatpush1.bf16.msra.mxu0 %v90
    %169 = vmatprep.subr.bf16.mxu0 0
    %170 = vmatpush1.bf16.msra.mxu0 0
    %171 = vmatprep.subr.bf16.mxu0 0
    %172 = vmatpush1.bf16.msra.mxu0 0
    %173 = vmatprep.subr.bf16.mxu0 0
    %174 = vmatpush1.bf16.msra.mxu0 0
    %175 = vmatprep.subr.bf16.mxu0 0
    %176 = vmatpush1.bf16.msra.mxu0 0
    %177 = vmatprep.subr.bf16.mxu0 0
    %178 = vmatpush1.bf16.msra.mxu0 0
    %179 = vmatprep.subr.bf16.mxu0 0
    %180 = vmatpush1.bf16.msra.mxu0 0
    %181 = vmatprep.subr.bf16.mxu0 0
    %182 = vmatpush1.bf16.msra.mxu0 0
    %183 = vmatprep.subr.bf16.mxu0 0
    %184 = vmatpush1.bf16.msra.mxu0 0
    %185 = vmatprep.subr.bf16.mxu0 0
    %186 = vmatpush1.bf16.msra.mxu0 0
    %187 = vmatprep.subr.bf16.mxu0 0
    %188 = vmatpush1.bf16.msra.mxu0 0
    %189 = vmatprep.subr.bf16.mxu0 0
    %190 = vmatpush1.bf16.msra.mxu0 0
    %191 = vmatprep.subr.bf16.mxu0 0
    %192 = vmatpush1.bf16.msra.mxu0 0
    %193 = vmatprep.subr.bf16.mxu0 0
    %194 = vmatpush1.bf16.msra.mxu0 0
    %195 = vmatprep.subr.bf16.mxu0 0
    %196 = vmatpush1.bf16.msra.mxu0 0
    %197 = vmatprep.mubr.bf16.mxu0 0
    %198 = vmatmul.mubr.bf16.gmra.mrb[0].mxu0 %v160
    %v199 = vpop.f32.mrb[0].mxu0
    %v200 = vadd.f32 1e-12, %v199
    %v201 = vpop.f32.mrb[0].mxu0
    %v202 = vpop.f32.mrb[0].mxu0
    %v203 = vadd.f32 1e-12, %v202
    %v204 = vpop.f32.mrb[0].mxu0
    %205 = vmatprep.mubr.bf16.mxu0 0
    %206 = vmatmul.mubr.bf16.gmra.mrb[0].mxu0 %v163
    %v207 = vpop.f32.mrb[0].mxu0
    %v208 = vadd.f32 1e-12, %v207
    %v209 = vpop.f32.mrb[0].mxu0
    %v210 = vpop.f32.mrb[0].mxu0
    %v211 = vadd.f32 1e-12, %v210
    %v212 = vpop.f32.mrb[0].mxu0
    %213 = vdwg.mxu0
    %v214 = vrsqrt.pop %v200
    %v215 = vrsqrt.pop %v203
    %v216 = vrsqrt.pop %v208
    %v217 = vrsqrt.pop %v211
    %v218 = vmul.f32 %v149, %v214
    %v219 = vmul.f32 %v150, %v215
    %v220 = vmul.f32 %v151, %v216
    %v221 = vmul.f32 %v152, %v217
    %v222 = vpack.c.bf16 %v219, %v218
    %v223 = vpack.c.bf16 %v221, %v220
    %v224 = vlaneseq
    %v225 = vshrl.u32 %v224, 7
    %v226 = vsub.s32 1, %v225
    %v227 = vrot.slane %v70, %v226
    %v232 = vunpack.c.l.b16 %v21
    %v233 = vunpack.c.l.b16 %v22
    %v234 = vunpack.c.l.b16 %v23
    %v235 = vunpack.c.l.b16 %v24
    %v236 = vpack.c.b16 %v233, %v232
    %v237 = vpack.c.b16 %v235, %v234
    %v241 = vsel %vm93, %v222, 0
    %v244 = vsel %vm93, %v223, 0
    %246 = vmatprep.subr.bf16.mxu0 0
    %247 = vmatpush1.bf16.msra.mxu0 %v236
    %248 = vmatprep.subr.bf16.mxu0 0
    %249 = vmatpush1.bf16.msra.mxu0 %v237
    %250 = vmatprep.subr.bf16.mxu0 0
    %251 = vmatpush1.bf16.msra.mxu0 0
    %252 = vmatprep.subr.bf16.mxu0 0
    %253 = vmatpush1.bf16.msra.mxu0 0
    %254 = vmatprep.subr.bf16.mxu0 0
    %255 = vmatpush1.bf16.msra.mxu0 0
    %256 = vmatprep.subr.bf16.mxu0 0
    %257 = vmatpush1.bf16.msra.mxu0 0
    %258 = vmatprep.subr.bf16.mxu0 0
    %259 = vmatpush1.bf16.msra.mxu0 0
    %260 = vmatprep.subr.bf16.mxu0 0
    %261 = vmatpush1.bf16.msra.mxu0 0
    %262 = vmatprep.subr.bf16.mxu0 0
    %263 = vmatpush1.bf16.msra.mxu0 0
    %264 = vmatprep.subr.bf16.mxu0 0
    %265 = vmatpush1.bf16.msra.mxu0 0
    %266 = vmatprep.subr.bf16.mxu0 0
    %267 = vmatpush1.bf16.msra.mxu0 0
    %268 = vmatprep.subr.bf16.mxu0 0
    %269 = vmatpush1.bf16.msra.mxu0 0
    %270 = vmatprep.subr.bf16.mxu0 0
    %271 = vmatpush1.bf16.msra.mxu0 0
    %272 = vmatprep.subr.bf16.mxu0 0
    %273 = vmatpush1.bf16.msra.mxu0 0
    %274 = vmatprep.subr.bf16.mxu0 0
    %275 = vmatpush1.bf16.msra.mxu0 0
    %276 = vmatprep.subr.bf16.mxu0 0
    %277 = vmatpush1.bf16.msra.mxu0 0
    %278 = vmatprep.mubr.bf16.mxu0 0
    %279 = vmatmul.mubr.bf16.gmra.mrb[0].mxu0 %v241
    %v280 = vpop.f32.mrb[0].mxu0
    %v281 = vadd.f32 %v227, %v280
    %v282 = vpop.f32.mrb[0].mxu0
    %v283 = vpop.f32.mrb[0].mxu0
    %v284 = vadd.f32 %v227, %v283
    %v285 = vpop.f32.mrb[0].mxu0
    %286 = vmatprep.mubr.bf16.mxu0 0
    %287 = vmatmul.mubr.bf16.gmra.mrb[0].mxu0 %v244
    %v288 = vpop.f32.mrb[0].mxu0
    %v289 = vadd.f32 %v227, %v288
    %v290 = vpop.f32.mrb[0].mxu0
    %v291 = vpop.f32.mrb[0].mxu0
    %v292 = vadd.f32 %v227, %v291
    %v293 = vpop.f32.mrb[0].mxu0
    %294 = vdwg.mxu0
    %v295 = vlaneseq
    %v296 = vshrl.u32 %v295, 7
    %v297 = vsub.s32 2, %v296
    %v298 = vrot.slane %v72, %v297
    %v303 = vunpack.c.l.b16 %v25
    %v304 = vunpack.c.l.b16 %v26
    %v305 = vunpack.c.l.b16 %v27
    %v306 = vunpack.c.l.b16 %v28
    %v307 = vpack.c.b16 %v304, %v303
    %v308 = vpack.c.b16 %v306, %v305
    %311 = vmatprep.subr.bf16.mxu0 0
    %312 = vmatpush1.bf16.msra.mxu0 %v307
    %313 = vmatprep.subr.bf16.mxu0 0
    %314 = vmatpush1.bf16.msra.mxu0 %v308
    %315 = vmatprep.subr.bf16.mxu0 0
    %316 = vmatpush1.bf16.msra.mxu0 0
    %317 = vmatprep.subr.bf16.mxu0 0
    %318 = vmatpush1.bf16.msra.mxu0 0
    %319 = vmatprep.subr.bf16.mxu0 0
    %320 = vmatpush1.bf16.msra.mxu0 0
    %321 = vmatprep.subr.bf16.mxu0 0
    %322 = vmatpush1.bf16.msra.mxu0 0
    %323 = vmatprep.subr.bf16.mxu0 0
    %324 = vmatpush1.bf16.msra.mxu0 0
    %325 = vmatprep.subr.bf16.mxu0 0
    %326 = vmatpush1.bf16.msra.mxu0 0
    %327 = vmatprep.subr.bf16.mxu0 0
    %328 = vmatpush1.bf16.msra.mxu0 0
    %329 = vmatprep.subr.bf16.mxu0 0
    %330 = vmatpush1.bf16.msra.mxu0 0
    %331 = vmatprep.subr.bf16.mxu0 0
    %332 = vmatpush1.bf16.msra.mxu0 0
    %333 = vmatprep.subr.bf16.mxu0 0
    %334 = vmatpush1.bf16.msra.mxu0 0
    %335 = vmatprep.subr.bf16.mxu0 0
    %336 = vmatpush1.bf16.msra.mxu0 0
    %337 = vmatprep.subr.bf16.mxu0 0
    %338 = vmatpush1.bf16.msra.mxu0 0
    %339 = vmatprep.subr.bf16.mxu0 0
    %340 = vmatpush1.bf16.msra.mxu0 0
    %341 = vmatprep.subr.bf16.mxu0 0
    %342 = vmatpush1.bf16.msra.mxu0 0
    %343 = vmatprep.mubr.bf16.mxu0 0
    %344 = vmatmul.mubr.bf16.gmra.mrb[0].mxu0 %v241
    %v345 = vpop.f32.mrb[0].mxu0
    %v346 = vadd.f32 %v298, %v345
    %v347 = vpop.f32.mrb[0].mxu0
    %v348 = vpop.f32.mrb[0].mxu0
    %v349 = vadd.f32 %v298, %v348
    %v350 = vpop.f32.mrb[0].mxu0
    %351 = vmatprep.mubr.bf16.mxu0 0
    %352 = vmatmul.mubr.bf16.gmra.mrb[0].mxu0 %v244
    %v353 = vpop.f32.mrb[0].mxu0
    %v354 = vadd.f32 %v298, %v353
    %v355 = vpop.f32.mrb[0].mxu0
    %v356 = vpop.f32.mrb[0].mxu0
    %v357 = vadd.f32 %v298, %v356
    %v358 = vpop.f32.mrb[0].mxu0
    %359 = vdwg.mxu0
    %v360 = vadd.f32 %v218, %v220
    %v361 = vadd.f32 %v219, %v221
    %v362 = vmul.f32 %v360, 0.5
    %v363 = vmul.f32 %v361, 0.5
    %v364 = vpack.c.bf16 %v363, %v362
    %v365 = vlaneseq
    %v366 = vshrl.u32 %v365, 7
    %v367 = vsub.s32 0, %v366
    %v368 = vrot.slane %v70, %v367
    %v373 = vunpack.c.l.b16 %v17
    %v374 = vunpack.c.l.b16 %v18
    %v375 = vunpack.c.l.b16 %v19
    %v376 = vunpack.c.l.b16 %v20
    %v377 = vpack.c.b16 %v374, %v373
    %v378 = vpack.c.b16 %v376, %v375
    %v382 = vsel %vm93, %v364, 0
    %384 = vmatprep.subr.bf16.mxu0 0
    %385 = vmatpush1.bf16.msra.mxu0 %v377
    %386 = vmatprep.subr.bf16.mxu0 0
    %387 = vmatpush1.bf16.msra.mxu0 %v378
    %388 = vmatprep.subr.bf16.mxu0 0
    %389 = vmatpush1.bf16.msra.mxu0 0
    %390 = vmatprep.subr.bf16.mxu0 0
    %391 = vmatpush1.bf16.msra.mxu0 0
    %392 = vmatprep.subr.bf16.mxu0 0
    %393 = vmatpush1.bf16.msra.mxu0 0
    %394 = vmatprep.subr.bf16.mxu0 0
    %395 = vmatpush1.bf16.msra.mxu0 0
    %396 = vmatprep.subr.bf16.mxu0 0
    %397 = vmatpush1.bf16.msra.mxu0 0
    %398 = vmatprep.subr.bf16.mxu0 0
    %399 = vmatpush1.bf16.msra.mxu0 0
    %400 = vmatprep.subr.bf16.mxu0 0
    %401 = vmatpush1.bf16.msra.mxu0 0
    %402 = vmatprep.subr.bf16.mxu0 0
    %403 = vmatpush1.bf16.msra.mxu0 0
    %404 = vmatprep.subr.bf16.mxu0 0
    %405 = vmatpush1.bf16.msra.mxu0 0
    %406 = vmatprep.subr.bf16.mxu0 0
    %407 = vmatpush1.bf16.msra.mxu0 0
    %408 = vmatprep.subr.bf16.mxu0 0
    %409 = vmatpush1.bf16.msra.mxu0 0
    %410 = vmatprep.subr.bf16.mxu0 0
    %411 = vmatpush1.bf16.msra.mxu0 0
    %412 = vmatprep.subr.bf16.mxu0 0
    %413 = vmatpush1.bf16.msra.mxu0 0
    %414 = vmatprep.subr.bf16.mxu0 0
    %415 = vmatpush1.bf16.msra.mxu0 0
    %416 = vmatprep.mubr.bf16.mxu0 0
    %417 = vmatmul.mubr.bf16.gmra.mrb[0].mxu0 %v382
    %v418 = vpop.f32.mrb[0].mxu0
    %v419 = vadd.f32 %v368, %v418
    %v420 = vpop.f32.mrb[0].mxu0
    %v421 = vpop.f32.mrb[0].mxu0
    %v422 = vadd.f32 %v368, %v421
    %v423 = vpop.f32.mrb[0].mxu0
    %424 = vdwg.mxu0
    %v425 = vpack.c.bf16 %v422, %v419
    %v426 = vunpack.c.l.bf16 %v49
    %v427 = vunpack.c.l.bf16 %v50
    %v428 = vunpack.c.l.bf16 %v51
    %v429 = vunpack.c.l.bf16 %v52
    %v430 = vunpack.c.l.bf16 %v53
    %v431 = vunpack.c.l.bf16 %v54
    %v432 = vunpack.c.l.bf16 %v55
    %v433 = vunpack.c.l.bf16 %v56
    %v434 = vunpack.c.l.bf16 %v57
    %v435 = vunpack.c.l.bf16 %v58
    %v436 = vunpack.c.l.bf16 %v59
    %v437 = vunpack.c.l.bf16 %v60
    %v438 = vunpack.c.l.bf16 %v61
    %v439 = vunpack.c.l.bf16 %v62
    %v440 = vunpack.c.l.bf16 %v63
    %v441 = vunpack.c.l.bf16 %v64
    %v442 = vmul.f32 %v281, %v426
    %v443 = vmul.f32 %v284, %v427
    %v444 = vmul.f32 %v289, %v428
    %v445 = vmul.f32 %v292, %v429
    %v446 = vmul.f32 %v281, %v430
    %v447 = vmul.f32 %v284, %v431
    %v448 = vmul.f32 %v289, %v432
    %v449 = vmul.f32 %v292, %v433
    %v450 = vmul.f32 %v281, %v434
    %v451 = vmul.f32 %v284, %v435
    %v452 = vmul.f32 %v289, %v436
    %v453 = vmul.f32 %v292, %v437
    %v454 = vmul.f32 %v281, %v438
    %v455 = vmul.f32 %v284, %v439
    %v456 = vmul.f32 %v289, %v440
    %v457 = vmul.f32 %v292, %v441
    %v458 = vpack.c.bf16 %v443, %v442
    %v459 = vpack.c.bf16 %v445, %v444
    %v460 = vpack.c.bf16 %v447, %v446
    %v461 = vpack.c.bf16 %v449, %v448
    %v462 = vpack.c.bf16 %v451, %v450
    %v463 = vpack.c.bf16 %v453, %v452
    %v464 = vpack.c.bf16 %v455, %v454
    %v465 = vpack.c.bf16 %v457, %v456
    %v466 = vmul.f32 %v346, %v426
    %v467 = vmul.f32 %v349, %v427
    %v468 = vmul.f32 %v354, %v428
    %v469 = vmul.f32 %v357, %v429
    %v470 = vmul.f32 %v346, %v430
    %v471 = vmul.f32 %v349, %v431
    %v472 = vmul.f32 %v354, %v432
    %v473 = vmul.f32 %v357, %v433
    %v474 = vmul.f32 %v346, %v434
    %v475 = vmul.f32 %v349, %v435
    %v476 = vmul.f32 %v354, %v436
    %v477 = vmul.f32 %v357, %v437
    %v478 = vmul.f32 %v346, %v438
    %v479 = vmul.f32 %v349, %v439
    %v480 = vmul.f32 %v354, %v440
    %v481 = vmul.f32 %v357, %v441
    %v482 = vpack.c.bf16 %v467, %v466
    %v483 = vpack.c.bf16 %v469, %v468
    %v484 = vpack.c.bf16 %v471, %v470
    %v485 = vpack.c.bf16 %v473, %v472
    %v486 = vpack.c.bf16 %v475, %v474
    %v487 = vpack.c.bf16 %v477, %v476
    %v488 = vpack.c.bf16 %v479, %v478
    %v489 = vpack.c.bf16 %v481, %v480
    %v491 = vsel %vm93, %v425, 0
    %v494 = vsel %vm93, %v458, 0
    %v497 = vsel %vm93, %v459, 0
    %v500 = vsel %vm93, %v460, 0
    %v503 = vsel %vm93, %v461, 0
    %v506 = vsel %vm93, %v462, 0
    %v509 = vsel %vm93, %v463, 0
    %v512 = vsel %vm93, %v464, 0
    %v515 = vsel %vm93, %v465, 0
    %517 = vmatprep.subr.bf16.mxu0 0
    %518 = vmatpush1.bf16.xpose.msra.mxu0 %v494
    %519 = vmatprep.subr.bf16.mxu0 0
    %520 = vmatpush1.bf16.xpose.msra.mxu0 %v497
    %521 = vmatprep.subr.bf16.mxu0 0
    %522 = vmatpush1.bf16.xpose.msra.mxu0 %v500
    %523 = vmatprep.subr.bf16.mxu0 0
    %524 = vmatpush1.bf16.xpose.msra.mxu0 %v503
    %525 = vmatprep.subr.bf16.mxu0 0
    %526 = vmatpush1.bf16.xpose.msra.mxu0 %v506
    %527 = vmatprep.subr.bf16.mxu0 0
    %528 = vmatpush1.bf16.xpose.msra.mxu0 %v509
    %529 = vmatprep.subr.bf16.mxu0 0
    %530 = vmatpush1.bf16.xpose.msra.mxu0 %v512
    %531 = vmatprep.subr.bf16.mxu0 0
    %532 = vmatpush1.bf16.xpose.msra.mxu0 %v515
    %533 = vmatprep.subr.bf16.mxu0 0
    %534 = vmatpush1.bf16.xpose.msra.mxu0 0
    %535 = vmatprep.subr.bf16.mxu0 0
    %536 = vmatpush1.bf16.xpose.msra.mxu0 0
    %537 = vmatprep.subr.bf16.mxu0 0
    %538 = vmatpush1.bf16.xpose.msra.mxu0 0
    %539 = vmatprep.subr.bf16.mxu0 0
    %540 = vmatpush1.bf16.xpose.msra.mxu0 0
    %541 = vmatprep.subr.bf16.mxu0 0
    %542 = vmatpush1.bf16.xpose.msra.mxu0 0
    %543 = vmatprep.subr.bf16.mxu0 0
    %544 = vmatpush1.bf16.xpose.msra.mxu0 0
    %545 = vmatprep.subr.bf16.mxu0 0
    %546 = vmatpush1.bf16.xpose.msra.mxu0 0
    %547 = vmatprep.subr.bf16.mxu0 0
    %548 = vmatpush1.bf16.xpose.msra.mxu0 0
    %549 = vmatprep.mubr.bf16.mxu0 0
    %550 = vmatmul.mubr.bf16.gmra.mrb[0].mxu0 %v491
    %v551 = vpop.f32.mrb[0].mxu0
    %v552 = vadd.f32 %v67, %v551
    %v553 = vpop.f32.mrb[0].mxu0
    %v554 = vpop.f32.mrb[0].mxu0
    %v555 = vadd.f32 %v68, %v554
    %v556 = vpop.f32.mrb[0].mxu0
    %557 = vdwg.mxu0
    %558 = vmax.xlane.f32.xlu0 %v552
    %v559 = vpop.xlane.xlu0 %558
    %560 = vmax.xlane.f32.xlu0 %v555
    %v561 = vpop.xlane.xlu0 %560
    %v562 = vsub.f32 %v552, %v559
    %v563 = vsub.f32 %v555, %v561
    %v564 = vmul.f32 %v562, 1.442695
    %v565 = vpow.pop %v564
    %v566 = vmul.f32 %v563, 1.442695
    %v567 = vpow.pop %v566
    %v568 = vpack.c.bf16 %v567, %v565
    %569 = vmatprep.subr.bf16.mxu0 0
    %570 = vmatpush1.bf16.msra.mxu0 %v482
    %571 = vmatprep.subr.bf16.mxu0 0
    %572 = vmatpush1.bf16.msra.mxu0 %v483
    %573 = vmatprep.subr.bf16.mxu0 0
    %574 = vmatpush1.bf16.msra.mxu0 %v484
    %575 = vmatprep.subr.bf16.mxu0 0
    %576 = vmatpush1.bf16.msra.mxu0 %v485
    %577 = vmatprep.subr.bf16.mxu0 0
    %578 = vmatpush1.bf16.msra.mxu0 %v486
    %579 = vmatprep.subr.bf16.mxu0 0
    %580 = vmatpush1.bf16.msra.mxu0 %v487
    %581 = vmatprep.subr.bf16.mxu0 0
    %582 = vmatpush1.bf16.msra.mxu0 %v488
    %583 = vmatprep.subr.bf16.mxu0 0
    %584 = vmatpush1.bf16.msra.mxu0 %v489
    %585 = vmatprep.subr.bf16.mxu0 0
    %586 = vmatpush1.bf16.msra.mxu0 0
    %587 = vmatprep.subr.bf16.mxu0 0
    %588 = vmatpush1.bf16.msra.mxu0 0
    %589 = vmatprep.subr.bf16.mxu0 0
    %590 = vmatpush1.bf16.msra.mxu0 0
    %591 = vmatprep.subr.bf16.mxu0 0
    %592 = vmatpush1.bf16.msra.mxu0 0
    %593 = vmatprep.subr.bf16.mxu0 0
    %594 = vmatpush1.bf16.msra.mxu0 0
    %595 = vmatprep.subr.bf16.mxu0 0
    %596 = vmatpush1.bf16.msra.mxu0 0
    %597 = vmatprep.subr.bf16.mxu0 0
    %598 = vmatpush1.bf16.msra.mxu0 0
    %599 = vmatprep.subr.bf16.mxu0 0
    %600 = vmatpush1.bf16.msra.mxu0 0
    %601 = vmatprep.mubr.bf16.mxu0 0
    %602 = vmatmul.mubr.bf16.gmra.mrb[0].mxu0 %v568
    %v603 = vpop.f32.mrb[0].mxu0
    %v604 = vadd.f32 0.0, %v603
    %v605 = vpop.f32.mrb[0].mxu0
    %v606 = vpop.f32.mrb[0].mxu0
    %v607 = vadd.f32 0.0, %v606
    %v608 = vpop.f32.mrb[0].mxu0
    %609 = vdwg.mxu0
    %v626 = vunpack.c.l.b16 %v49
    %v627 = vunpack.c.l.b16 %v50
    %v628 = vunpack.c.l.b16 %v51
    %v629 = vunpack.c.l.b16 %v52
    %v630 = vunpack.c.l.b16 %v53
    %v631 = vunpack.c.l.b16 %v54
    %v632 = vunpack.c.l.b16 %v55
    %v633 = vunpack.c.l.b16 %v56
    %v634 = vunpack.c.l.b16 %v57
    %v635 = vunpack.c.l.b16 %v58
    %v636 = vunpack.c.l.b16 %v59
    %v637 = vunpack.c.l.b16 %v60
    %v638 = vunpack.c.l.b16 %v61
    %v639 = vunpack.c.l.b16 %v62
    %v640 = vunpack.c.l.b16 %v63
    %v641 = vunpack.c.l.b16 %v64
    %v642 = vpack.c.b16 %v627, %v626
    %v643 = vpack.c.b16 %v629, %v628
    %v644 = vpack.c.b16 %v631, %v630
    %v645 = vpack.c.b16 %v633, %v632
    %v646 = vpack.c.b16 %v635, %v634
    %v647 = vpack.c.b16 %v637, %v636
    %v648 = vpack.c.b16 %v639, %v638
    %v649 = vpack.c.b16 %v641, %v640
    %658 = vmatprep.subr.bf16.mxu0 0
    %659 = vmatpush1.bf16.msra.mxu0 %v642
    %660 = vmatprep.subr.bf16.mxu0 0
    %661 = vmatpush1.bf16.msra.mxu0 %v643
    %662 = vmatprep.subr.bf16.mxu0 0
    %663 = vmatpush1.bf16.msra.mxu0 %v644
    %664 = vmatprep.subr.bf16.mxu0 0
    %665 = vmatpush1.bf16.msra.mxu0 %v645
    %666 = vmatprep.subr.bf16.mxu0 0
    %667 = vmatpush1.bf16.msra.mxu0 %v646
    %668 = vmatprep.subr.bf16.mxu0 0
    %669 = vmatpush1.bf16.msra.mxu0 %v647
    %670 = vmatprep.subr.bf16.mxu0 0
    %671 = vmatpush1.bf16.msra.mxu0 %v648
    %672 = vmatprep.subr.bf16.mxu0 0
    %673 = vmatpush1.bf16.msra.mxu0 %v649
    %674 = vmatprep.subr.bf16.mxu0 0
    %675 = vmatpush1.bf16.msra.mxu0 0
    %676 = vmatprep.subr.bf16.mxu0 0
    %677 = vmatpush1.bf16.msra.mxu0 0
    %678 = vmatprep.subr.bf16.mxu0 0
    %679 = vmatpush1.bf16.msra.mxu0 0
    %680 = vmatprep.subr.bf16.mxu0 0
    %681 = vmatpush1.bf16.msra.mxu0 0
    %682 = vmatprep.subr.bf16.mxu0 0
    %683 = vmatpush1.bf16.msra.mxu0 0
    %684 = vmatprep.subr.bf16.mxu0 0
    %685 = vmatpush1.bf16.msra.mxu0 0
    %686 = vmatprep.subr.bf16.mxu0 0
    %687 = vmatpush1.bf16.msra.mxu0 0
    %688 = vmatprep.subr.bf16.mxu0 0
    %689 = vmatpush1.bf16.msra.mxu0 0
    %690 = vmatprep.mubr.bf16.mxu0 0
    %691 = vmatmul.mubr.bf16.gmra.mrb[0].mxu0 %v568
    %v692 = vpop.f32.mrb[0].mxu0
    %v693 = vadd.f32 0.0, %v692
    %v694 = vpop.f32.mrb[0].mxu0
    %v695 = vpop.f32.mrb[0].mxu0
    %v696 = vadd.f32 0.0, %v695
    %v697 = vpop.f32.mrb[0].mxu0
    %698 = vdwg.mxu0
    %v699 = vrcp.pop %v693
    %v700 = vrcp.pop %v696
    %v701 = vmul.f32 %v604, %v699
    %v702 = vmul.f32 %v607, %v700
    %v703 = vpack.c.bf16 %v702, %v701
    %v704 = vlaneseq
    %v705 = vshrl.u32 %v704, 7
    %v706 = vsub.s32 3, %v705
    %v707 = vrot.slane %v72, %v706
    %v712 = vunpack.c.l.b16 %v29
    %v713 = vunpack.c.l.b16 %v30
    %v714 = vunpack.c.l.b16 %v31
    %v715 = vunpack.c.l.b16 %v32
    %v716 = vpack.c.b16 %v713, %v712
    %v717 = vpack.c.b16 %v715, %v714
    %v721 = vsel %vm93, %v703, 0
    %723 = vmatprep.subr.bf16.mxu0 0
    %724 = vmatpush1.bf16.msra.mxu0 %v716
    %725 = vmatprep.subr.bf16.mxu0 0
    %726 = vmatpush1.bf16.msra.mxu0 %v717
    %727 = vmatprep.subr.bf16.mxu0 0
    %728 = vmatpush1.bf16.msra.mxu0 0
    %729 = vmatprep.subr.bf16.mxu0 0
    %730 = vmatpush1.bf16.msra.mxu0 0
    %731 = vmatprep.subr.bf16.mxu0 0
    %732 = vmatpush1.bf16.msra.mxu0 0
    %733 = vmatprep.subr.bf16.mxu0 0
    %734 = vmatpush1.bf16.msra.mxu0 0
    %735 = vmatprep.subr.bf16.mxu0 0
    %736 = vmatpush1.bf16.msra.mxu0 0
    %737 = vmatprep.subr.bf16.mxu0 0
    %738 = vmatpush1.bf16.msra.mxu0 0
    %739 = vmatprep.subr.bf16.mxu0 0
    %740 = vmatpush1.bf16.msra.mxu0 0
    %741 = vmatprep.subr.bf16.mxu0 0
    %742 = vmatpush1.bf16.msra.mxu0 0
    %743 = vmatprep.subr.bf16.mxu0 0
    %744 = vmatpush1.bf16.msra.mxu0 0
    %745 = vmatprep.subr.bf16.mxu0 0
    %746 = vmatpush1.bf16.msra.mxu0 0
    %747 = vmatprep.subr.bf16.mxu0 0
    %748 = vmatpush1.bf16.msra.mxu0 0
    %749 = vmatprep.subr.bf16.mxu0 0
    %750 = vmatpush1.bf16.msra.mxu0 0
    %751 = vmatprep.subr.bf16.mxu0 0
    %752 = vmatpush1.bf16.msra.mxu0 0
    %753 = vmatprep.subr.bf16.mxu0 0
    %754 = vmatpush1.bf16.msra.mxu0 0
    %755 = vmatprep.mubr.bf16.mxu0 0
    %756 = vmatmul.mubr.bf16.gmra.mrb[0].mxu0 %v721
    %v757 = vpop.f32.mrb[0].mxu0
    %v758 = vadd.f32 %v707, %v757
    %v759 = vpop.f32.mrb[0].mxu0
    %v760 = vpop.f32.mrb[0].mxu0
    %v761 = vadd.f32 %v707, %v760
    %v762 = vpop.f32.mrb[0].mxu0
    %763 = vdwg.mxu0
    %v764 = vadd.f32 %v77, %v758
    %v765 = vadd.f32 %v78, %v761
    %v766 = vpack.c.bf16 %v765, %v764
    %v768 = vsel %vm93, %v766, 0
    %770 = vmatprep.subr.bf16.mxu0 0
    %771 = vmatpush1.bf16.msra.mxu0 %v89
    %772 = vmatprep.subr.bf16.mxu0 0
    %773 = vmatpush1.bf16.msra.mxu0 %v90
    %774 = vmatprep.subr.bf16.mxu0 0
    %775 = vmatpush1.bf16.msra.mxu0 0
    %776 = vmatprep.subr.bf16.mxu0 0
    %777 = vmatpush1.bf16.msra.mxu0 0
    %778 = vmatprep.subr.bf16.mxu0 0
    %779 = vmatpush1.bf16.msra.mxu0 0
    %780 = vmatprep.subr.bf16.mxu0 0
    %781 = vmatpush1.bf16.msra.mxu0 0
    %782 = vmatprep.subr.bf16.mxu0 0
    %783 = vmatpush1.bf16.msra.mxu0 0
    %784 = vmatprep.subr.bf16.mxu0 0
    %785 = vmatpush1.bf16.msra.mxu0 0
    %786 = vmatprep.subr.bf16.mxu0 0
    %787 = vmatpush1.bf16.msra.mxu0 0
    %788 = vmatprep.subr.bf16.mxu0 0
    %789 = vmatpush1.bf16.msra.mxu0 0
    %790 = vmatprep.subr.bf16.mxu0 0
    %791 = vmatpush1.bf16.msra.mxu0 0
    %792 = vmatprep.subr.bf16.mxu0 0
    %793 = vmatpush1.bf16.msra.mxu0 0
    %794 = vmatprep.subr.bf16.mxu0 0
    %795 = vmatpush1.bf16.msra.mxu0 0
    %796 = vmatprep.subr.bf16.mxu0 0
    %797 = vmatpush1.bf16.msra.mxu0 0
    %798 = vmatprep.subr.bf16.mxu0 0
    %799 = vmatpush1.bf16.msra.mxu0 0
    %800 = vmatprep.subr.bf16.mxu0 0
    %801 = vmatpush1.bf16.msra.mxu0 0
    %802 = vmatprep.mubr.bf16.mxu0 0
    %803 = vmatmul.mubr.bf16.gmra.mrb[0].mxu0 %v768
    %v804 = vpop.f32.mrb[0].mxu0
    %v805 = vadd.f32 0.0, %v804
    %v806 = vpop.f32.mrb[0].mxu0
    %v807 = vpop.f32.mrb[0].mxu0
    %v808 = vadd.f32 0.0, %v807
    %v809 = vpop.f32.mrb[0].mxu0
    %810 = vdwg.mxu0
    %v811 = vsub.f32 %v764, %v805
    %v812 = vsub.f32 %v765, %v808
    %v813 = vmul.f32 %v811, %v811
    %v814 = vmul.f32 %v812, %v812
    %v815 = vpack.c.bf16 %v814, %v813
    %v817 = vsel %vm93, %v815, 0
    %819 = vmatprep.subr.bf16.mxu0 0
    %820 = vmatpush1.bf16.msra.mxu0 %v89
    %821 = vmatprep.subr.bf16.mxu0 0
    %822 = vmatpush1.bf16.msra.mxu0 %v90
    %823 = vmatprep.subr.bf16.mxu0 0
    %824 = vmatpush1.bf16.msra.mxu0 0
    %825 = vmatprep.subr.bf16.mxu0 0
    %826 = vmatpush1.bf16.msra.mxu0 0
    %827 = vmatprep.subr.bf16.mxu0 0
    %828 = vmatpush1.bf16.msra.mxu0 0
    %829 = vmatprep.subr.bf16.mxu0 0
    %830 = vmatpush1.bf16.msra.mxu0 0
    %831 = vmatprep.subr.bf16.mxu0 0
    %832 = vmatpush1.bf16.msra.mxu0 0
    %833 = vmatprep.subr.bf16.mxu0 0
    %834 = vmatpush1.bf16.msra.mxu0 0
    %835 = vmatprep.subr.bf16.mxu0 0
    %836 = vmatpush1.bf16.msra.mxu0 0
    %837 = vmatprep.subr.bf16.mxu0 0
    %838 = vmatpush1.bf16.msra.mxu0 0
    %839 = vmatprep.subr.bf16.mxu0 0
    %840 = vmatpush1.bf16.msra.mxu0 0
    %841 = vmatprep.subr.bf16.mxu0 0
    %842 = vmatpush1.bf16.msra.mxu0 0
    %843 = vmatprep.subr.bf16.mxu0 0
    %844 = vmatpush1.bf16.msra.mxu0 0
    %845 = vmatprep.subr.bf16.mxu0 0
    %846 = vmatpush1.bf16.msra.mxu0 0
    %847 = vmatprep.subr.bf16.mxu0 0
    %848 = vmatpush1.bf16.msra.mxu0 0
    %849 = vmatprep.subr.bf16.mxu0 0
    %850 = vmatpush1.bf16.msra.mxu0 0
    %851 = vmatprep.mubr.bf16.mxu0 0
    %852 = vmatmul.mubr.bf16.gmra.mrb[0].mxu0 %v817
    %v853 = vpop.f32.mrb[0].mxu0
    %v854 = vadd.f32 1e-12, %v853
    %v855 = vpop.f32.mrb[0].mxu0
    %v856 = vpop.f32.mrb[0].mxu0
    %v857 = vadd.f32 1e-12, %v856
    %v858 = vpop.f32.mrb[0].mxu0
    %859 = vdwg.mxu0
    %v860 = vrsqrt.pop %v854
    %v861 = vrsqrt.pop %v857
    %v862 = vmul.f32 %v811, %v860
    %v863 = vmul.f32 %v812, %v861
    %v864 = vpack.c.bf16 %v863, %v862
    %v865 = vlaneseq
    %v866 = vshrl.u32 %v865, 7
    %v867 = vsub.s32 4, %v866
    %v868 = vrot.slane %v74, %v867
    %v873 = vunpack.c.l.b16 %v33
    %v874 = vunpack.c.l.b16 %v34
    %v875 = vunpack.c.l.b16 %v35
    %v876 = vunpack.c.l.b16 %v36
    %v877 = vpack.c.b16 %v874, %v873
    %v878 = vpack.c.b16 %v876, %v875
    %v882 = vsel %vm93, %v864, 0
    %884 = vmatprep.subr.bf16.mxu0 0
    %885 = vmatpush1.bf16.msra.mxu0 %v877
    %886 = vmatprep.subr.bf16.mxu0 0
    %887 = vmatpush1.bf16.msra.mxu0 %v878
    %888 = vmatprep.subr.bf16.mxu0 0
    %889 = vmatpush1.bf16.msra.mxu0 0
    %890 = vmatprep.subr.bf16.mxu0 0
    %891 = vmatpush1.bf16.msra.mxu0 0
    %892 = vmatprep.subr.bf16.mxu0 0
    %893 = vmatpush1.bf16.msra.mxu0 0
    %894 = vmatprep.subr.bf16.mxu0 0
    %895 = vmatpush1.bf16.msra.mxu0 0
    %896 = vmatprep.subr.bf16.mxu0 0
    %897 = vmatpush1.bf16.msra.mxu0 0
    %898 = vmatprep.subr.bf16.mxu0 0
    %899 = vmatpush1.bf16.msra.mxu0 0
    %900 = vmatprep.subr.bf16.mxu0 0
    %901 = vmatpush1.bf16.msra.mxu0 0
    %902 = vmatprep.subr.bf16.mxu0 0
    %903 = vmatpush1.bf16.msra.mxu0 0
    %904 = vmatprep.subr.bf16.mxu0 0
    %905 = vmatpush1.bf16.msra.mxu0 0
    %906 = vmatprep.subr.bf16.mxu0 0
    %907 = vmatpush1.bf16.msra.mxu0 0
    %908 = vmatprep.subr.bf16.mxu0 0
    %909 = vmatpush1.bf16.msra.mxu0 0
    %910 = vmatprep.subr.bf16.mxu0 0
    %911 = vmatpush1.bf16.msra.mxu0 0
    %912 = vmatprep.subr.bf16.mxu0 0
    %913 = vmatpush1.bf16.msra.mxu0 0
    %914 = vmatprep.subr.bf16.mxu0 0
    %915 = vmatpush1.bf16.msra.mxu0 0
    %916 = vmatprep.mubr.bf16.mxu0 0
    %917 = vmatmul.mubr.bf16.gmra.mrb[0].mxu0 %v882
    %v918 = vpop.f32.mrb[0].mxu0
    %v919 = vadd.f32 %v868, %v918
    %v920 = vpop.f32.mrb[0].mxu0
    %v921 = vpop.f32.mrb[0].mxu0
    %v922 = vadd.f32 %v868, %v921
    %v923 = vpop.f32.mrb[0].mxu0
    %924 = vdwg.mxu0
    %v925 = vmul.f32 %v919, 0.5
    %v926 = vmul.f32 %v922, 0.5
    %v927 = vmul.f32 %v919, 0.70710677
    %v928 = vmul.f32 %v922, 0.70710677
    %v929 = verf.f32.pop %v927
    %v930 = verf.f32.pop %v928
    %v931 = vadd.f32 %v929, 1.0
    %v932 = vadd.f32 %v930, 1.0
    %v933 = vmul.f32 %v925, %v931
    %v934 = vmul.f32 %v926, %v932
    %v935 = vpack.c.bf16 %v934, %v933
    %v936 = vlaneseq
    %v937 = vshrl.u32 %v936, 7
    %v938 = vsub.s32 5, %v937
    %v939 = vrot.slane %v74, %v938
    %v948 = vunpack.c.l.b16 %v37
    %v949 = vunpack.c.l.b16 %v38
    %v950 = vunpack.c.l.b16 %v39
    %v951 = vunpack.c.l.b16 %v40
    %v952 = vunpack.c.l.b16 %v41
    %v953 = vunpack.c.l.b16 %v42
    %v954 = vunpack.c.l.b16 %v43
    %v955 = vunpack.c.l.b16 %v44
    %v956 = vpack.c.b16 %v949, %v948
    %v957 = vpack.c.b16 %v951, %v950
    %v958 = vpack.c.b16 %v953, %v952
    %v959 = vpack.c.b16 %v955, %v954
    %vm964 = vcmask 523264
    %v966 = vsel %vm964, %v935, 0
    %968 = vmatprep.subr.bf16.mxu0 0
    %969 = vmatpush1.bf16.msra.mxu0 %v956
    %970 = vmatprep.subr.bf16.mxu0 0
    %971 = vmatpush1.bf16.msra.mxu0 %v957
    %972 = vmatprep.subr.bf16.mxu0 0
    %973 = vmatpush1.bf16.msra.mxu0 %v958
    %974 = vmatprep.subr.bf16.mxu0 0
    %975 = vmatpush1.bf16.msra.mxu0 %v959
    %976 = vmatprep.subr.bf16.mxu0 0
    %977 = vmatpush1.bf16.msra.mxu0 0
    %978 = vmatprep.subr.bf16.mxu0 0
    %979 = vmatpush1.bf16.msra.mxu0 0
    %980 = vmatprep.subr.bf16.mxu0 0
    %981 = vmatpush1.bf16.msra.mxu0 0
    %982 = vmatprep.subr.bf16.mxu0 0
    %983 = vmatpush1.bf16.msra.mxu0 0
    %984 = vmatprep.subr.bf16.mxu0 0
    %985 = vmatpush1.bf16.msra.mxu0 0
    %986 = vmatprep.subr.bf16.mxu0 0
    %987 = vmatpush1.bf16.msra.mxu0 0
    %988 = vmatprep.subr.bf16.mxu0 0
    %989 = vmatpush1.bf16.msra.mxu0 0
    %990 = vmatprep.subr.bf16.mxu0 0
    %991 = vmatpush1.bf16.msra.mxu0 0
    %992 = vmatprep.subr.bf16.mxu0 0
    %993 = vmatpush1.bf16.msra.mxu0 0
    %994 = vmatprep.subr.bf16.mxu0 0
    %995 = vmatpush1.bf16.msra.mxu0 0
    %996 = vmatprep.subr.bf16.mxu0 0
    %997 = vmatpush1.bf16.msra.mxu0 0
    %998 = vmatprep.subr.bf16.mxu0 0
    %999 = vmatpush1.bf16.msra.mxu0 0
    %1000 = vmatprep.mubr.bf16.mxu0 0
    %1001 = vmatmul.mubr.bf16.gmra.mrb[0].mxu0 %v966
    %v1002 = vpop.f32.mrb[0].mxu0
    %v1003 = vadd.f32 %v939, %v1002
    %v1004 = vpop.f32.mrb[0].mxu0
    %v1005 = vpop.f32.mrb[0].mxu0
    %v1006 = vadd.f32 %v939, %v1005
    %v1007 = vpop.f32.mrb[0].mxu0
    %1008 = vdwg.mxu0
    %v1009 = vadd.f32 %v764, %v1003
    %v1010 = vadd.f32 %v765, %v1006
    %1011 = vst.msk [vmem:[#allocation2] sm:$0xff] %vm93, %v1009
    %1012 = vst.msk [vmem:[#allocation2 + $0x8] sm:$0xff] %vm93, %v1010
    // Predicated region
    $region10: #{funnel_layer.1} parent=1 // pred_check
      _
    $region11: #{funnel_layer.1} parent=1 // pred_check_branch
      %1014 = sbr.rel (0) target = $region13
    $region12: #{funnel_layer.1} parent=1 // pred_region
      %s1016 = ssub.s32 256, 256
      %1017 = vsyncadd [#allocation3], %s1016
      %s1018 = sshll.u32 [#allocation2], 4
      %s1019 = int_to_ptr.vmem [resolvable:$true] %s1018
      %1024 = dma.vmem_to_hbm [thread:$0]  %s1019, 256, %s2, [#allocation3], 128, 128, 8
    $region13: #{funnel_layer.1} parent=1 // pred_fallthru
      _
    // Predicated region
    $region14: #{funnel_layer.1} parent=1 // pred_check
      _
    $region15: #{funnel_layer.1} parent=1 // pred_check_branch
      %1026 = sbr.rel (0) target = $region17
    $region16: #{funnel_layer.1} parent=1 // pred_region
      %1027 = dma.done [#allocation3], 256
    $region17: #{funnel_layer.1} parent=1 // pred_fallthru
      _
    %1028 = vsyncpa [#allocation3], 1

</llo_original>
